<compile_context>
chip_gen: v5e
topology: v5e:2x2
jax: 0.10.0
libtpu: 0.0.40
codegen_flags: <defaults>
</compile_context>

<pallas_src>
import functools

import jax
import jax.numpy as jnp
from jax.experimental import pallas as pl
from jax.experimental.pallas import tpu as pltpu


def _round_up(x, m):
    return (x + m - 1) // m * m


def _cdiv(a, b):
    return (a + b - 1) // b


def _pick_tn(Cout, M):
    if Cout % 128 != 0:
        return Cout                                  # 64-wide layer1 widths: full dim
    if Cout % 256 == 0 and Cout >= 512 and (M > 256 or M <= 64):
        return 256                                   # big-M or tiny-M weight-DMA bound
    return 128


def _pick_tm(M, Cout, G, tn):
    tm = M if M <= 256 else min(512, M)
    # keep >= 2 parallel grid blocks per call (v7x has 2 TensorCores)
    while tm > 64 and G * _cdiv(M, tm) * (Cout // tn) < 2:
        tm //= 2
    return tm


def _maybe_buffered_spec(shape, index_map, buffers):
    if buffers > 2:
        try:
            return pl.BlockSpec(shape, index_map, pipeline_mode=pl.Buffered(buffers))
        except Exception:                            # older jax: no pipeline_mode kwarg
            pass
    return pl.BlockSpec(shape, index_map)


# ----------------------------------------------------------------------------
# Pallas kernel 1: (grouped) conv-as-matmul.  Taps folded into K, so each grid block
# is a single bf16 MXU dot with an f32 epilogue (BN affine, optional residual, ReLU)
# and one store -- no accumulator scratch.
# ----------------------------------------------------------------------------
def _mm_kernel(a_ref, b_ref, s_ref, t_ref, *rest, relu, has_res):
    if has_res:
        r_ref, o_ref = rest
    else:
        (o_ref,) = rest
    y = jnp.dot(a_ref[0], b_ref[0], preferred_element_type=jnp.float32)
    y = y * s_ref[0] + t_ref[0]
    if has_res:
        y = y + r_ref[0].astype(jnp.float32)
    if relu:
        y = jnp.maximum(y, 0.0)
    o_ref[0] = y.astype(o_ref.dtype)


@functools.lru_cache(maxsize=None)
def _build_conv_mm(G, Mp, K, Cout, tm, tn, relu, has_res, out_dt, b_buffers):
    in_specs = [
        pl.BlockSpec((1, tm, K), lambda g, i, j: (g, i, 0)),
        _maybe_buffered_spec((1, K, tn), lambda g, i, j: (g, 0, j), b_buffers),
        pl.BlockSpec((1, 1, tn), lambda g, i, j: (g, 0, j)),
        pl.BlockSpec((1, 1, tn), lambda g, i, j: (g, 0, j)),
    ]
    if has_res:
        in_specs.append(pl.BlockSpec((1, tm, tn), lambda g, i, j: (0, i, j)))
    fn = pl.pallas_call(
        functools.partial(_mm_kernel, relu=relu, has_res=has_res),
        out_shape=jax.ShapeDtypeStruct((G, Mp, Cout), out_dt),
        grid_spec=pltpu.PrefetchScalarGridSpec(
            num_scalar_prefetch=0,
            grid=(G, Mp // tm, Cout // tn),
            in_specs=in_specs,
            out_specs=pl.BlockSpec((1, tm, tn), lambda g, i, j: (g, i, j))),
        compiler_params=pltpu.CompilerParams(
            dimension_semantics=("parallel", "parallel", "parallel")),
    )
    return jax.jit(fn)


def conv_matmul(patches, w, scale, shift, *, relu=False, residual=None,
                out_dtype=jnp.bfloat16):
    """patches: (G, M, K); w: (G, K, Cg); scale/shift: (G, 1, Cg);
       residual (G==1 only): (1, M, Cg).  Returns (G, M, Cg)."""
    G, M, K = patches.shape
    Cout = w.shape[2]
    tn = _pick_tn(Cout, M)
    tm = _pick_tm(M, Cout, G, tn)
    Mp = _round_up(M, tm)
    a = patches.astype(jnp.bfloat16)
    if Mp != M:
        a = jnp.zeros((G, Mp, K), jnp.bfloat16).at[:, :M].set(a)
    args = [a, w.astype(jnp.bfloat16),
            scale.astype(jnp.float32), shift.astype(jnp.float32)]
    has_res = residual is not None
    if has_res:
        r = residual.astype(jnp.bfloat16)
        if Mp != M:
            r = jnp.zeros((1, Mp, Cout), jnp.bfloat16).at[:, :M].set(r)
        args.append(r)
    buffers = 3 if M <= 64 else 2                      # deeper weight prefetch, tiny M
    fn = _build_conv_mm(G, Mp, K, Cout, tm, tn, bool(relu), has_res,
                        jnp.dtype(out_dtype), buffers)
    out = fn(*args)
    return out[:, :M] if Mp != M else out


# ----------------------------------------------------------------------------
# Pallas kernel 2: tiled reduction over the leading "tap" axis (stem maxpool).
# Small pools (M < 256) fall back to plain jnp (launch-bound otherwise).
# ----------------------------------------------------------------------------
def _reduce_max_kernel(x_ref, o_ref):
    o_ref[...] = jnp.max(x_ref[...].astype(jnp.float32), axis=0).astype(o_ref.dtype)


def _reduce_sum_kernel(s_ref, x_ref, o_ref):
    acc = jnp.sum(x_ref[...].astype(jnp.float32), axis=0)
    o_ref[...] = (acc * s_ref[0]).astype(o_ref.dtype)


@functools.lru_cache(maxsize=None)
def _build_reduce(R, Mp, C, tm, op, out_dt):
    x_spec = pl.BlockSpec((R, tm, C), lambda i: (0, i, 0))
    o_spec = pl.BlockSpec((tm, C), lambda i: (i, 0))
    if op == "max":
        kernel, in_specs = _reduce_max_kernel, [x_spec]
    else:
        kernel = _reduce_sum_kernel
        in_specs = [pl.BlockSpec(memory_space=pltpu.MemorySpace.SMEM), x_spec]
    fn = pl.pallas_call(
        kernel,
        out_shape=jax.ShapeDtypeStruct((Mp, C), out_dt),
        grid=(Mp // tm,),
        in_specs=in_specs,
        out_specs=o_spec,
        compiler_params=pltpu.CompilerParams(dimension_semantics=("parallel",)),
    )
    return jax.jit(fn)


def pool_reduce(patches, op, scale=1.0, out_dtype=jnp.bfloat16):
    """patches: (R, M, C) -> (M, C); max or scaled sum over the leading axis."""
    R, M, C = patches.shape
    if M < 256:                                        # tiny: avoid pallas launch cost
        x = patches.astype(jnp.float32)
        y = jnp.max(x, axis=0) if op == "max" else jnp.sum(x, axis=0) * scale
        return y.astype(out_dtype)
    tm = 256
    Mp = _round_up(M, tm)
    if Mp != M:
        fill = float("-inf") if op == "max" else 0.0
        patches = jnp.full((R, Mp, C), fill, patches.dtype).at[:, :M].set(patches)
    fn = _build_reduce(R, Mp, C, tm, op, jnp.dtype(out_dtype))
    out = fn(patches) if op == "max" else fn(jnp.asarray([scale], jnp.float32), patches)
    return out[:M] if Mp != M else out


# ----------------------------------------------------------------------------
# Pallas kernel 3: split-attention weighted radix sum (large spatial maps only;
# attention broadcast happens in-kernel, not in HBM).
# ----------------------------------------------------------------------------
def _splat_sum_kernel(x0_ref, x1_ref, a_ref, o_ref):
    a = a_ref[0]                                               # (2, C) f32
    y = (x0_ref[0].astype(jnp.float32) * a[0:1, :]
         + x1_ref[0].astype(jnp.float32) * a[1:2, :])
    o_ref[0] = y.astype(o_ref.dtype)


@functools.lru_cache(maxsize=None)
def _build_splat_sum(N, HW, C, out_dt):
    fn = pl.pallas_call(
        _splat_sum_kernel,
        out_shape=jax.ShapeDtypeStruct((N, HW, C), out_dt),
        grid=(N,),
        in_specs=[pl.BlockSpec((1, HW, C), lambda n: (n, 0, 0)),
                  pl.BlockSpec((1, HW, C), lambda n: (n, 0, 0)),
                  pl.BlockSpec((1, 2, C), lambda n: (n, 0, 0))],
        out_specs=pl.BlockSpec((1, HW, C), lambda n: (n, 0, 0)),
        compiler_params=pltpu.CompilerParams(dimension_semantics=("parallel",)),
    )
    return jax.jit(fn)


def splat_weighted_sum(x0, x1, att):
    N, HW, C = x0.shape
    fn = _build_splat_sum(N, HW, C, jnp.dtype(x0.dtype))
    return fn(x0, x1, att.astype(jnp.float32))


# ----------------------------------------------------------------------------
# JAX glue: im2col patch extraction, conv / pool wrappers
# ----------------------------------------------------------------------------
def extract_patches(x, k, stride, pad, pad_value=0.0, fold=True):
    N, H, W, C = x.shape
    if pad > 0:
        x = jnp.pad(x, ((0, 0), (pad, pad), (pad, pad), (0, 0)),
                    constant_values=pad_value)
    Ho = (H + 2 * pad - k) // stride + 1
    Wo = (W + 2 * pad - k) // stride + 1
    taps = []
    for i in range(k):
        for j in range(k):
            sl = x[:, i:i + (Ho - 1) * stride + 1:stride,
                      j:j + (Wo - 1) * stride + 1:stride, :]
            taps.append(sl.reshape(N * Ho * Wo, C))
    if fold:      # (M, k*k*C): taps folded into the contraction dim (tap-major)
        out = jnp.stack(taps, axis=1).reshape(N * Ho * Wo, k * k * C)
    else:         # (k*k, M, C): taps on the leading axis (pooling reductions)
        out = jnp.stack(taps, axis=0)
    return out, Ho, Wo


def conv_bn_act(x, cw, *, stride=1, pad=0, relu=True, residual=None):
    """Non-grouped conv: x (N,H,W,Cin) bf16; cw['w'] (1, P, Cin, Cout) bf16."""
    N, H, W, Cin = x.shape
    G, P, cin_g, Cout = cw["w"].shape
    if P == 1:
        patches, Ho, Wo = x.reshape(N * H * W, Cin), H, W
    else:
        k = int(round(P ** 0.5))
        patches, Ho, Wo = extract_patches(x, k, stride, pad, fold=True)
    M = N * Ho * Wo
    wmat = cw["w"].reshape(1, P * cin_g, Cout)
    res = residual.reshape(1, M, Cout) if residual is not None else None
    y = conv_matmul(patches[None], wmat, cw["s"], cw["t"], relu=relu, residual=res)
    return y[0].reshape(N, Ho, Wo, Cout)


def max_pool_3x3_s2(x):
    N, H, W, C = x.shape
    patches, Ho, Wo = extract_patches(x, 3, 2, 1, pad_value=float("-inf"), fold=False)
    return pool_reduce(patches, "max").reshape(N, Ho, Wo, C)


def avg_pool(x, k, stride, pad, divisor):
    N, H, W, C = x.shape
    patches, Ho, Wo = extract_patches(x, k, stride, pad, pad_value=0.0, fold=False)
    return pool_reduce(patches, "sum", scale=1.0 / divisor).reshape(N, Ho, Wo, C)


# ----------------------------------------------------------------------------
# ResNeSt building blocks
# ----------------------------------------------------------------------------
def r_softmax(atten, radix, cardinality):
    N = atten.shape[0]
    x = atten.reshape(N, cardinality, radix, -1)
    x = jnp.transpose(x, (0, 2, 1, 3))
    x = jax.nn.softmax(x, axis=1)
    return x.reshape(N, -1)


def splat_conv(x, pw, radix=2, cardinality=1):
    N, H, W, _ = x.shape
    cw = pw["conv"]
    G, P, cin_g, C = cw["w"].shape                     # G == radix
    k = int(round(P ** 0.5))
    pats, Ho, Wo = [], None, None
    for g in range(G):
        xg = x[..., g * cin_g:(g + 1) * cin_g]
        p, Ho, Wo = extract_patches(xg, k, 1, 1, fold=True)
        pats.append(p)
    patches = jnp.stack(pats, axis=0)                  # (G, M, 9*cin_g)
    wmat = cw["w"].reshape(G, P * cin_g, C)
    out = conv_matmul(patches, wmat, cw["s"], cw["t"], relu=True)     # (G, M, C)
    HW = Ho * Wo
    splits = out.reshape(G, N, HW, C)
    # gap = adaptive_avg_pool2d(sum of splits) -> tiny (N, C); plain jnp in f32
    gap = jnp.sum(jnp.mean(splits.astype(jnp.float32), axis=2), axis=0)
    # fc1 (1x1 conv + bias) -> bn1 -> relu ; fc2 (1x1 conv + bias): tiny, plain jnp
    g1 = jnp.maximum(gap @ pw["fc1_w"] * pw["s1"] + pw["t1"], 0.0)
    atten = g1 @ pw["fc2_w"] + pw["fc2_b"]             # (N, radix*C)
    atten = r_softmax(atten, radix, cardinality).reshape(N, radix, C)
    if HW < 128:
        # tiny spatial maps (layer2-tail/3/4): jnp weighted sum (launch-bound otherwise)
        a = jnp.transpose(atten, (1, 0, 2))[:, :, None, :]            # (radix, N, 1, C)
        y = jnp.sum(splits.astype(jnp.float32) * a, axis=0).astype(x.dtype)
    else:
        y = splat_weighted_sum(splits[0], splits[1], atten)
    return y.reshape(N, Ho, Wo, C)


def bottleneck(x, bw, cfg):
    stride, avd, has_down = cfg
    out = conv_bn_act(x, bw["conv1"], relu=True)
    out = splat_conv(out, bw["splat"])
    if avd:              # AvgPool2d(3, stride, padding=1), count_include_pad=True
        out = avg_pool(out, 3, stride, 1, 9.0)
    if has_down:
        r = x
        if stride > 1:
            # TODO(synk): ResNeSt uses ceil_mode=True / count_include_pad=False; identical
            # here because the spatial dims are exact multiples of the stride.
            r = avg_pool(r, stride, stride, 0, float(stride * stride))
        residual = conv_bn_act(r, bw["down"], relu=False)
    else:
        residual = x
    # conv3 -> bn3 -> (+ residual) -> relu, fused into the matmul epilogue
    return conv_bn_act(out, bw["conv3"], relu=True, residual=residual)


def entnet_forward(x_nchw, weights, cfg):
    x = jnp.transpose(x_nchw, (0, 2, 3, 1)).astype(jnp.bfloat16)   # NCHW -> NHWC bf16
    sw = weights["stem"]
    x = conv_bn_act(x, sw[0], stride=2, pad=1, relu=True)
    x = conv_bn_act(x, sw[1], stride=1, pad=1, relu=True)
    x = conv_bn_act(x, sw[2], stride=1, pad=1, relu=True)
    x = max_pool_3x3_s2(x)
    for layer_w, layer_cfg in zip(weights["layers"], cfg):
        for bw, bc in zip(layer_w, layer_cfg):
            x = bottleneck(x, bw, bc)
    feat = jnp.mean(x.astype(jnp.float32), axis=(1, 2))            # GAP -> (N, 2048)
    # classifier: Dropout(0.5) == identity at inference; Linear(2048, num_classes)
    return feat @ weights["cls_w"] + weights["cls_b"]


# ----------------------------------------------------------------------------
# Deterministic parameter construction (ResNeSt-50: radix=2, cardinality=1, bw=64,
# deep_stem stem_width=32, avg_down=True, avd=True, avd_first=False) + classifier.
# ----------------------------------------------------------------------------
class _Init:
    def __init__(self, key):
        self.key = key

    def _next(self):
        self.key, k = jax.random.split(self.key)
        return k

    def conv(self, cout, cin, kh, kw):
        std = (2.0 / (cin * kh * kw)) ** 0.5
        return jax.random.normal(self._next(), (cout, cin, kh, kw), jnp.float32) * std

    @staticmethod
    def bn(c):
        return dict(gamma=jnp.ones((c,), jnp.float32), beta=jnp.zeros((c,), jnp.float32),
                    mean=jnp.zeros((c,), jnp.float32), var=jnp.ones((c,), jnp.float32))

    @staticmethod
    def bias(c):
        return jnp.zeros((c,), jnp.float32)


def make_params(key):
    init = _Init(key)
    radix, cardinality = 2, 1
    sw = 32
    P = {"stem": dict(conv1_w=init.conv(sw, 3, 3, 3), bn1=init.bn(sw),
                      conv2_w=init.conv(sw, sw, 3, 3), bn2=init.bn(sw),
                      conv3_w=init.conv(sw * 2, sw, 3, 3), bn3=init.bn(sw * 2))}
    layers_cfg = [(64, 3, 1), (128, 4, 2), (256, 6, 2), (512, 3, 2)]
    inplanes = sw * 2
    P["layers"] = []
    for planes, nblocks, stride in layers_cfg:
        blocks = []
        for bi in range(nblocks):
            s = stride if bi == 0 else 1
            gw = planes  # group_width for bottleneck_width=64, cardinality=1
            inter = max(gw * radix // 4, 32)
            blk = dict(
                conv1_w=init.conv(gw, inplanes, 1, 1), bn1=init.bn(gw),
                conv2=dict(
                    conv_w=init.conv(gw * radix, gw // (cardinality * radix), 3, 3),
                    bn0=init.bn(gw * radix),
                    fc1_w=init.conv(inter, gw, 1, 1), fc1_b=init.bias(inter),
                    bn1=init.bn(inter),
                    fc2_w=init.conv(gw * radix, inter, 1, 1), fc2_b=init.bias(gw * radix)),
                conv3_w=init.conv(planes * 4, gw, 1, 1), bn3=init.bn(planes * 4),
                stride=s,
                avd=(s > 1),                       # layer1 first block: is_first=False
                has_down=(s != 1 or inplanes != planes * 4))
            if blk["has_down"]:
                blk["down_conv_w"] = init.conv(planes * 4, inplanes, 1, 1)
                blk["down_bn"] = init.bn(planes * 4)
            blocks.append(blk)
            inplanes = planes * 4
        P["layers"].append(blocks)
    return P


def make_classifier(key, num_classes=6, in_features=2048):
    kw_, kb_ = jax.random.split(key)
    bound_w = (6.0 / (in_features + num_classes)) ** 0.5      # xavier_uniform_
    w = jax.random.uniform(kw_, (num_classes, in_features), jnp.float32,
                           -bound_w, bound_w)
    bound_b = 1.0 / (in_features ** 0.5)                      # torch Linear default bias
    b = jax.random.uniform(kb_, (num_classes,), jnp.float32, -bound_b, bound_b)
    return w, b


def _bn_fold(bn, conv_bias=None, eps=1e-5):
    scale = bn["gamma"] / jnp.sqrt(bn["var"] + eps)
    shift = bn["beta"] - bn["mean"] * scale
    if conv_bias is not None:
        shift = shift + conv_bias * scale
    return scale.astype(jnp.float32), shift.astype(jnp.float32)


def _prep_conv(w, groups=1):
    """torch (Cout, Cin_g, kh, kw) -> (G, P, Cin_g, cg) bf16 (tap-major, Cin-fast)."""
    Cout, cin_g, kh, kw = w.shape
    cg = Cout // groups
    mats = []
    for g in range(groups):
        wg = jnp.transpose(w[g * cg:(g + 1) * cg], (2, 3, 1, 0))   # (kh, kw, cin_g, cg)
        mats.append(wg.reshape(kh * kw, cin_g, cg))
    return jnp.stack(mats, axis=0).astype(jnp.bfloat16)


def _conv_entry(w, bn, groups=1):
    s, t = _bn_fold(bn)
    wp = _prep_conv(w, groups)
    G, _, _, cg = wp.shape
    return {"w": wp, "s": s.reshape(G, 1, cg), "t": t.reshape(G, 1, cg)}


def _pad_cout(w, bn, target):
    """Zero-pad output channels (and BN stats) so the stored output is lane-dense."""
    cout = w.shape[0]
    if cout >= target:
        return w, bn
    p = target - cout
    w = jnp.pad(w, ((0, p), (0, 0), (0, 0), (0, 0)))
    bn = dict(gamma=jnp.pad(bn["gamma"], (0, p), constant_values=1.0),
              beta=jnp.pad(bn["beta"], (0, p)),
              mean=jnp.pad(bn["mean"], (0, p)),
              var=jnp.pad(bn["var"], (0, p), constant_values=1.0))
    return w, bn


def _pad_cin(w, target):
    """Zero-pad input channels (consumes zero-padded activations; numerics unchanged)."""
    cin = w.shape[1]
    if cin >= target:
        return w
    return jnp.pad(w, ((0, 0), (0, target - cin), (0, 0), (0, 0)))


def prepare_params(raw, cls_w, cls_b, stem_pad=128):
    st = raw["stem"]
    w1, bn1 = _pad_cout(st["conv1_w"], st["bn1"], stem_pad)
    w2, bn2 = _pad_cout(_pad_cin(st["conv2_w"], stem_pad), st["bn2"], stem_pad)
    w3, bn3 = _pad_cout(_pad_cin(st["conv3_w"], stem_pad), st["bn3"], stem_pad)
    stem_w = [_conv_entry(w1, bn1), _conv_entry(w2, bn2), _conv_entry(w3, bn3)]

    layers_w, layers_cfg = [], []
    first_block = True
    for blocks in raw["layers"]:
        bws, bcs = [], []
        for blk in blocks:
            conv1_w = blk["conv1_w"]
            down_w = blk.get("down_conv_w")
            if first_block:
                # first consumers of the lane-dense (zero-padded) stem activation
                conv1_w = _pad_cin(conv1_w, stem_pad)
                if down_w is not None:
                    down_w = _pad_cin(down_w, stem_pad)
                first_block = False
            c2 = blk["conv2"]
            s1, t1 = _bn_fold(c2["bn1"], conv_bias=c2["fc1_b"])
            splat = {"conv": _conv_entry(c2["conv_w"], c2["bn0"], groups=2),
                     "fc1_w": jnp.transpose(c2["fc1_w"][:, :, 0, 0], (1, 0)),
                     "s1": s1, "t1": t1,
                     "fc2_w": jnp.transpose(c2["fc2_w"][:, :, 0, 0], (1, 0)),
                     "fc2_b": c2["fc2_b"]}
            bw = {"conv1": _conv_entry(conv1_w, blk["bn1"]),
                  "splat": splat,
                  "conv3": _conv_entry(blk["conv3_w"], blk["bn3"]),
                  "down": (_conv_entry(down_w, blk["down_bn"])
                           if blk["has_down"] else None)}
            bws.append(bw)
            bcs.append((int(blk["stride"]), bool(blk["avd"]), bool(blk["has_down"])))
        layers_w.append(bws)
        layers_cfg.append(tuple(bcs))
    weights = {"stem": stem_w, "layers": layers_w,
               "cls_w": jnp.transpose(cls_w, (1, 0)).astype(jnp.float32),
               "cls_b": cls_b.astype(jnp.float32)}
    return weights, tuple(layers_cfg)


if __name__ == "__main__":
    key = jax.random.PRNGKey(0)
    pkey, ckey, xkey = jax.random.split(key, 3)
    raw_params = make_params(pkey)
    cls_w, cls_b = make_classifier(ckey, num_classes=6)
    weights, cfg = prepare_params(raw_params, cls_w, cls_b)

    x = jax.random.normal(xkey, (2, 3, 64, 64), jnp.float32)   # NCHW like PyTorch
    fwd = jax.jit(entnet_forward, static_argnums=2)
    out = jax.block_until_ready(fwd(x, weights, cfg))
    assert out.shape == (2, 6), out.shape
    assert bool(jnp.all(jnp.isfinite(out)))
    print("KERNEL_OK")
</pallas_src>

<mosaic_0001>
module attributes {stable_mosaic.version = 11 : i64} {
  func.func @_mm_kernel(%arg0: i32, %arg1: i32, %arg2: i32, %arg3: memref<1x512x27xbf16, #tpu.memory_space<vmem>>, %arg4: memref<1x27x128xbf16, #tpu.memory_space<vmem>>, %arg5: memref<1x1x128xf32, #tpu.memory_space<vmem>>, %arg6: memref<1x1x128xf32, #tpu.memory_space<vmem>>, %arg7: memref<1x512x128xbf16, #tpu.memory_space<vmem>>) attributes {dimension_semantics = [#tpu.dimension_semantics<parallel>, #tpu.dimension_semantics<parallel>, #tpu.dimension_semantics<parallel>], iteration_bounds = array<i64: 1, 4, 1>, scalar_prefetch = 0 : i64, scratch_operands = 0 : i64, tpu.core_type = #tpu.core_type<tc>, window_params = [{transform_indices = @transform_0, window_bounds = array<i64: 1, 512, 27>}, {transform_indices = @transform_1, window_bounds = array<i64: 1, 27, 128>}, {transform_indices = @transform_2, window_bounds = array<i64: 1, 1, 128>}, {transform_indices = @transform_3, window_bounds = array<i64: 1, 1, 128>}, {transform_indices = @transform_4, window_bounds = array<i64: 1, 512, 128>}]} {
    %c0 = arith.constant 0 : index
    %c0_0 = arith.constant 0 : index
    %c0_1 = arith.constant 0 : index
    %0 = vector.load %arg3[%c0, %c0_0, %c0_1] : memref<1x512x27xbf16, #tpu.memory_space<vmem>>, vector<1x512x27xbf16>
    %1 = vector.shape_cast %0 : vector<1x512x27xbf16> to vector<512x27xbf16>
    %c0_2 = arith.constant 0 : index
    %c0_3 = arith.constant 0 : index
    %c0_4 = arith.constant 0 : index
    %2 = vector.load %arg4[%c0_2, %c0_3, %c0_4] : memref<1x27x128xbf16, #tpu.memory_space<vmem>>, vector<1x27x128xbf16>
    %3 = vector.shape_cast %2 : vector<1x27x128xbf16> to vector<27x128xbf16>
    %cst = arith.constant dense<0.000000e+00> : vector<512x128xf32>
    %4 = tpu.matmul %1, %3, %cst {dimension_numbers = #tpu.dot_dimension_numbers<[1], [0], [0], [1], [0, 0, 1, 1], [], []>} : vector<512x27xbf16>, vector<27x128xbf16>, vector<512x128xf32> -> vector<512x128xf32>
    %c0_5 = arith.constant 0 : index
    %c0_6 = arith.constant 0 : index
    %c0_7 = arith.constant 0 : index
    %5 = vector.load %arg5[%c0_5, %c0_6, %c0_7] : memref<1x1x128xf32, #tpu.memory_space<vmem>>, vector<1x1x128xf32>
    %6 = vector.shape_cast %5 : vector<1x1x128xf32> to vector<1x128xf32>
    %7 = vector.broadcast %6 : vector<1x128xf32> to vector<512x128xf32>
    %8 = arith.mulf %4, %7 : vector<512x128xf32>
    %c0_8 = arith.constant 0 : index
    %c0_9 = arith.constant 0 : index
    %c0_10 = arith.constant 0 : index
    %9 = vector.load %arg6[%c0_8, %c0_9, %c0_10] : memref<1x1x128xf32, #tpu.memory_space<vmem>>, vector<1x1x128xf32>
    %10 = vector.shape_cast %9 : vector<1x1x128xf32> to vector<1x128xf32>
    %11 = vector.broadcast %10 : vector<1x128xf32> to vector<512x128xf32>
    %12 = arith.addf %8, %11 : vector<512x128xf32>
    %cst_11 = arith.constant 0.000000e+00 : f32
    %13 = vector.broadcast %cst_11 : f32 to vector<512x128xf32>
    %14 = arith.maximumf %12, %13 : vector<512x128xf32>
    %15 = arith.truncf %14 : vector<512x128xf32> to vector<512x128xbf16>
    %c0_12 = arith.constant 0 : index
    %c0_13 = arith.constant 0 : index
    %c0_14 = arith.constant 0 : index
    %16 = vector.load %arg7[%c0_12, %c0_13, %c0_14] : memref<1x512x128xbf16, #tpu.memory_space<vmem>>, vector<1x512x128xbf16>
    %17 = vector.shape_cast %16 : vector<1x512x128xbf16> to vector<512x128xbf16>
    %18 = vector.shape_cast %15 : vector<512x128xbf16> to vector<1x512x128xbf16>
    tpu.vector_store %arg7[%c0_12, %c0_13, %c0_14], %18 {strides = array<i32>} : memref<1x512x128xbf16, #tpu.memory_space<vmem>>, vector<1x512x128xbf16>,
    return
  }
  func.func @transform_0(%arg0: i32, %arg1: i32, %arg2: i32) -> (i32, i32, i32) {
    %c0_i32 = arith.constant 0 : i32
    %c0_i32_0 = arith.constant 0 : i32
    return %arg0, %arg1, %c0_i32 : i32, i32, i32
  }
  func.func @transform_1(%arg0: i32, %arg1: i32, %arg2: i32) -> (i32, i32, i32) {
    %c0_i32 = arith.constant 0 : i32
    %c0_i32_0 = arith.constant 0 : i32
    return %arg0, %c0_i32, %arg2 : i32, i32, i32
  }
  func.func @transform_2(%arg0: i32, %arg1: i32, %arg2: i32) -> (i32, i32, i32) {
    %c0_i32 = arith.constant 0 : i32
    %c0_i32_0 = arith.constant 0 : i32
    return %arg0, %c0_i32, %arg2 : i32, i32, i32
  }
  func.func @transform_3(%arg0: i32, %arg1: i32, %arg2: i32) -> (i32, i32, i32) {
    %c0_i32 = arith.constant 0 : i32
    %c0_i32_0 = arith.constant 0 : i32
    return %arg0, %c0_i32, %arg2 : i32, i32, i32
  }
  func.func @transform_4(%arg0: i32, %arg1: i32, %arg2: i32) -> (i32, i32, i32) {
    %c0_i32 = arith.constant 0 : i32
    return %arg0, %arg1, %arg2 : i32, i32, i32
  }
}

</mosaic_0001>

<llo_original>
// kernel: tpu_custom_call.1
$region0: #{tpu_custom_call.1}
  #allocation0 [shape = 'u32[]', space=smem, size = 0x4, offset = 0x4, fixed_abs, tag = 'smem constant byte address 0x4 - core index']
  #allocation1 [shape = 'u32[72,128]{1,0:T(1,128)}', space=vmem, size = 0x9000, scoped, tag = 'internal scratch']
  %s0 = inlined_call_operand.vmem [shape: bf16[1,2048,27], index: 0, kind: input, shape index: {}]
  %s1 = inlined_call_operand.vmem [shape: bf16[1,27,128], index: 1, kind: input, shape index: {}]
  %s2 = inlined_call_operand.vmem [shape: f32[1,1,128], index: 2, kind: input, shape index: {}]
  %s3 = inlined_call_operand.vmem [shape: f32[1,1,128], index: 3, kind: input, shape index: {}]
  %s4 = inlined_call_operand.hbm [shape: bf16[1,2048,128], index: 4, kind: output, shape index: {}]
  %s5 = sld [smem:[#allocation0]]
  $region49: #{tpu_custom_call.1} parent=0
    _
  %s7 = ssub.s32 1, %s5
  %s8 = scalar_select 0, %s7, %s5
  $region1: #{tpu_custom_call.1} parent=0
    #allocation2 [shape = 'u8[262144]{0}', space=vmem, size = 0x40000, scoped, tag = 'output window, operand 0']
    #allocation3 [shape = 's32[2]{0}', space=sflag, size = 0x8, scoped, tag = 'scoped memory for tpu_custom_call.1']
    %9 = vsyncpa [#allocation3], 0
    %s10 = scalar_lea.sflag [#allocation3], 1
    %11 = vsyncpa %s10, 0
    loop: start=0, step=1, limit=6
    $region2: #{tpu_custom_call.1} parent=1 // loop_pre_header
      _
    $region3: #{tpu_custom_call.1} parent=1 // loop_header
      %s13 = sphi 0, %s17
      %p14 = scmp.ge.s32.totalorder %s13, 6
      %s20 = sphi 0, %s39
      %s21 = sphi 0, %s35
      %s22 = sphi 0, %s31
      %s23 = sphi 0, %s20
      %s24 = sphi 0, %s21
      %s25 = sphi 0, %s22
      %s26 = sphi 0, %s23
      %s27 = sphi 0, %s24
      %s28 = sphi 0, %s25
      %s44 = sphi 0, %s46
      %s47 = sphi 0, %s44
      %s48 = sphi 0, %s47
      %s64 = sphi 0, %s48
      %s72 = sphi 0, %s74
      %s75 = sphi 0, %s72
      %s76 = sphi 0, %s75
      %s92 = sphi 0, %s76
      %s100 = sphi 0, %s102
      %s103 = sphi 0, %s100
      %s104 = sphi 0, %s103
      %s120 = sphi 0, %s104
      %s128 = sphi 0, %s130
      %s131 = sphi 0, %s128
      %s132 = sphi 0, %s131
      %s148 = sphi 0, %s132
      %s158 = sphi 0, %s160
      %s161 = sphi 0, %s158
      %s162 = sphi 0, %s161
      %s178 = sphi 0, %s162
    $region4: #{tpu_custom_call.1} parent=1 // loop_header_branch
      %16 = sbr.rel (%p14) target = $region8
    $region5: #{tpu_custom_call.1} parent=1 // loop_body
      %s18 = ssub.s32 %s13, 1
      %s19 = ssub.s32 %s13, 2
      %s29 = sadd.s32 1, %s22
      %p30 = scmp.ge.s32.totalorder %s29, 1
      %s31 = scalar_select %p30, 0, %s29
      %s32 = sadd.s32 1, %s21
      %s33 = scalar_select %p30, %s32, %s21
      %p34 = scmp.ge.s32.totalorder %s33, 4
      %s35 = scalar_select %p34, 0, %s33
      %s36 = sadd.s32 1, %s20
      %s37 = scalar_select %p34, %s36, %s20
      %p38 = scmp.ge.s32.totalorder %s37, 1
      %s39 = scalar_select %p38, 0, %s37
      %s40 = ssub.s32 %s20, %s39
      %s41 = ssub.s32 %s21, %s35
      %s42 = sor.u32 %s40, %s41
      %p43 = scmp.eq.s32.totalorder %s42, 0
      %s45 = sadd.s32 %s44, 1
      %s46 = scalar_select %p43, %s44, %s45
      %p49 = pneg %p43
      %p50 = scmp.eq.s32.totalorder %s13, 3
      %p51 = por %p49, %p50
      %p52 = scmp.ne.s32.totalorder %s44, %s47
      %p53 = scmp.eq.s32.totalorder %s13, 0
      %p54 = por %p52, %p53
      %p55 = scmp.ne.s32.totalorder %s44, %s47
      %p56 = scmp.eq.s32.totalorder %s18, 3
      %p57 = por %p55, %p56
      %p58 = scmp.ne.s32.totalorder %s47, %s48
      %p59 = scmp.eq.s32.totalorder %s18, 0
      %p60 = por %p58, %p59
      %p61 = scmp.ne.s32.totalorder %s47, %s48
      %p62 = scmp.eq.s32.totalorder %s19, 3
      %p63 = por %p61, %p62
      %p65 = scmp.ne.s32.totalorder %s48, %s64
      %p66 = scmp.eq.s32.totalorder %s19, 0
      %p67 = por %p65, %p66
      %s68 = ssub.s32 %s20, %s39
      %s69 = ssub.s32 %s22, %s31
      %s70 = sor.u32 %s68, %s69
      %p71 = scmp.eq.s32.totalorder %s70, 0
      %s73 = sadd.s32 %s72, 1
      %s74 = scalar_select %p71, %s72, %s73
      %p77 = pneg %p71
      %p78 = scmp.eq.s32.totalorder %s13, 3
      %p79 = por %p77, %p78
      %p80 = scmp.ne.s32.totalorder %s72, %s75
      %p81 = scmp.eq.s32.totalorder %s13, 0
      %p82 = por %p80, %p81
      %p83 = scmp.ne.s32.totalorder %s72, %s75
      %p84 = scmp.eq.s32.totalorder %s18, 3
      %p85 = por %p83, %p84
      %p86 = scmp.ne.s32.totalorder %s75, %s76
      %p87 = scmp.eq.s32.totalorder %s18, 0
      %p88 = por %p86, %p87
      %p89 = scmp.ne.s32.totalorder %s75, %s76
      %p90 = scmp.eq.s32.totalorder %s19, 3
      %p91 = por %p89, %p90
      %p93 = scmp.ne.s32.totalorder %s76, %s92
      %p94 = scmp.eq.s32.totalorder %s19, 0
      %p95 = por %p93, %p94
      %s96 = ssub.s32 %s20, %s39
      %s97 = ssub.s32 %s22, %s31
      %s98 = sor.u32 %s96, %s97
      %p99 = scmp.eq.s32.totalorder %s98, 0
      %s101 = sadd.s32 %s100, 1
      %s102 = scalar_select %p99, %s100, %s101
      %p105 = pneg %p99
      %p106 = scmp.eq.s32.totalorder %s13, 3
      %p107 = por %p105, %p106
      %p108 = scmp.ne.s32.totalorder %s100, %s103
      %p109 = scmp.eq.s32.totalorder %s13, 0
      %p110 = por %p108, %p109
      %p111 = scmp.ne.s32.totalorder %s100, %s103
      %p112 = scmp.eq.s32.totalorder %s18, 3
      %p113 = por %p111, %p112
      %p114 = scmp.ne.s32.totalorder %s103, %s104
      %p115 = scmp.eq.s32.totalorder %s18, 0
      %p116 = por %p114, %p115
      %p117 = scmp.ne.s32.totalorder %s103, %s104
      %p118 = scmp.eq.s32.totalorder %s19, 3
      %p119 = por %p117, %p118
      %p121 = scmp.ne.s32.totalorder %s104, %s120
      %p122 = scmp.eq.s32.totalorder %s19, 0
      %p123 = por %p121, %p122
      %s124 = ssub.s32 %s20, %s39
      %s125 = ssub.s32 %s22, %s31
      %s126 = sor.u32 %s124, %s125
      %p127 = scmp.eq.s32.totalorder %s126, 0
      %s129 = sadd.s32 %s128, 1
      %s130 = scalar_select %p127, %s128, %s129
      %p133 = pneg %p127
      %p134 = scmp.eq.s32.totalorder %s13, 3
      %p135 = por %p133, %p134
      %p136 = scmp.ne.s32.totalorder %s128, %s131
      %p137 = scmp.eq.s32.totalorder %s13, 0
      %p138 = por %p136, %p137
      %p139 = scmp.ne.s32.totalorder %s128, %s131
      %p140 = scmp.eq.s32.totalorder %s18, 3
      %p141 = por %p139, %p140
      %p142 = scmp.ne.s32.totalorder %s131, %s132
      %p143 = scmp.eq.s32.totalorder %s18, 0
      %p144 = por %p142, %p143
      %p145 = scmp.ne.s32.totalorder %s131, %s132
      %p146 = scmp.eq.s32.totalorder %s19, 3
      %p147 = por %p145, %p146
      %p149 = scmp.ne.s32.totalorder %s132, %s148
      %p150 = scmp.eq.s32.totalorder %s19, 0
      %p151 = por %p149, %p150
      %s152 = ssub.s32 %s20, %s39
      %s153 = ssub.s32 %s21, %s35
      %s154 = sor.u32 %s152, %s153
      %s155 = ssub.s32 %s22, %s31
      %s156 = sor.u32 %s154, %s155
      %p157 = scmp.eq.s32.totalorder %s156, 0
      %s159 = sadd.s32 %s158, 1
      %s160 = scalar_select %p157, %s158, %s159
      %p163 = pneg %p157
      %p164 = scmp.eq.s32.totalorder %s13, 3
      %p165 = por %p163, %p164
      %p166 = scmp.ne.s32.totalorder %s158, %s161
      %p167 = scmp.eq.s32.totalorder %s13, 0
      %p168 = por %p166, %p167
      %p169 = scmp.ne.s32.totalorder %s158, %s161
      %p170 = scmp.eq.s32.totalorder %s18, 3
      %p171 = por %p169, %p170
      %p172 = scmp.ne.s32.totalorder %s161, %s162
      %p173 = scmp.eq.s32.totalorder %s18, 0
      %p174 = por %p172, %p173
      %p175 = scmp.ne.s32.totalorder %s161, %s162
      %p176 = scmp.eq.s32.totalorder %s19, 3
      %p177 = por %p175, %p176
      %p179 = scmp.ne.s32.totalorder %s162, %s178
      %p180 = scmp.eq.s32.totalorder %s19, 0
      %p181 = por %p179, %p180
      %p182 = scmp.le.s32.totalorder 1, %s13
      %p183 = scmp.lt.s32.totalorder %s13, 5
      %p184 = pnand %p182, %p183
      %p185 = pneg %p184
      // Predicated region
      $region9: #{tpu_custom_call.1} parent=5 // pred_check
        _
      $region10: #{tpu_custom_call.1} parent=5 // pred_check_branch
        %187 = sbr.rel (%p184) target = $region12
      $region11: #{tpu_custom_call.1} parent=5 // pred_region
        %s188 = ssub.s32 %s13, 1
        // Predicated region
        $region13: #{tpu_custom_call.1} parent=11 // pred_check
          %p189 = pneg %p88
        $region14: #{tpu_custom_call.1} parent=11 // pred_check_branch
          %191 = sbr.rel (%p189) target = $region16
        $region15: #{tpu_custom_call.1} parent=11 // pred_region
          %p192 = scmp.lt.s32.totalorder %s23, 0
          %s193 = scalar_select %p192, %s23, 0
          %p194 = scmp.lt.s32.totalorder %s25, 0
          %s195 = scalar_select %p194, %s25, 0
          %s196 = smul.addr %s193, 4
          %s197 = sadd.s32 %s195, %s196
          %s198 = smul.addr %s197, 4
          %s199 = scalar_lea.vmem %s1, %s198
        $region16: #{tpu_custom_call.1} parent=11 // pred_fallthru
          _
        // Predicated region
        $region17: #{tpu_custom_call.1} parent=11 // pred_check
          %p200 = pneg %p116
        $region18: #{tpu_custom_call.1} parent=11 // pred_check_branch
          %202 = sbr.rel (%p200) target = $region20
        $region19: #{tpu_custom_call.1} parent=11 // pred_region
          %p203 = scmp.lt.s32.totalorder %s23, 0
          %s204 = scalar_select %p203, %s23, 0
          %p205 = scmp.lt.s32.totalorder %s25, 0
          %s206 = scalar_select %p205, %s25, 0
          %s207 = sadd.s32 %s206, %s204
          %s208 = scalar_lea.vmem %s2, %s207
        $region20: #{tpu_custom_call.1} parent=11 // pred_fallthru
          _
        // Predicated region
        $region21: #{tpu_custom_call.1} parent=11 // pred_check
          %p209 = pneg %p144
        $region22: #{tpu_custom_call.1} parent=11 // pred_check_branch
          %211 = sbr.rel (%p209) target = $region24
        $region23: #{tpu_custom_call.1} parent=11 // pred_region
          %p212 = scmp.lt.s32.totalorder %s23, 0
          %s213 = scalar_select %p212, %s23, 0
          %p214 = scmp.lt.s32.totalorder %s25, 0
          %s215 = scalar_select %p214, %s25, 0
          %s216 = sadd.s32 %s215, %s213
          %s217 = scalar_lea.vmem %s3, %s216
        $region24: #{tpu_custom_call.1} parent=11 // pred_fallthru
          _
      $region12: #{tpu_custom_call.1} parent=5 // pred_fallthru
        _
      %p218 = scmp.lt.s32.totalorder %s13, 4
      // Predicated region
      $region25: #{tpu_custom_call.1} parent=5 // pred_check
        %p219 = pneg %p218
      $region26: #{tpu_custom_call.1} parent=5 // pred_check_branch
        %221 = sbr.rel (%p219) target = $region28
      $region27: #{tpu_custom_call.1} parent=5 // pred_region
        // Predicated region
        $region29: #{tpu_custom_call.1} parent=27 // pred_check
          %p222 = pneg %p54
        $region30: #{tpu_custom_call.1} parent=27 // pred_check_branch
          %224 = sbr.rel (%p222) target = $region32
        $region31: #{tpu_custom_call.1} parent=27 // pred_region
          %s225 = smul.u32 64, %s21
          %p226 = scmp.lt.s32.totalorder %s20, 0
          %s227 = scalar_select %p226, %s20, 0
          %p228 = scmp.lt.s32.totalorder %s225, 255
          %s229 = scalar_select %p228, %s225, 255
          %s230 = smul.addr %s227, 256
          %s231 = sadd.s32 %s229, %s230
          %s232 = smul.addr %s231, 4
          %s233 = scalar_lea.vmem %s0, %s232
          %s234 = smul.u32 64, %s21
        $region32: #{tpu_custom_call.1} parent=27 // pred_fallthru
          _
      $region28: #{tpu_custom_call.1} parent=5 // pred_fallthru
        _
      %p235 = scmp.le.s32.totalorder 1, %s13
      %p236 = scmp.lt.s32.totalorder %s13, 5
      %p237 = pnand %p235, %p236
      %p238 = pneg %p237
      // Predicated region
      $region33: #{tpu_custom_call.1} parent=5 // pred_check
        _
      $region34: #{tpu_custom_call.1} parent=5 // pred_check_branch
        %240 = sbr.rel (%p237) target = $region36
      $region35: #{tpu_custom_call.1} parent=5 // pred_region
        %s241 = ssub.s32 %s13, 1
        %s242 = smul.u32 64, %s24
        %p243 = scmp.lt.s32.totalorder %s23, 0
        %s244 = scalar_select %p243, %s23, 0
        %p245 = scmp.lt.s32.totalorder %s242, 255
        %s246 = scalar_select %p245, %s242, 255
        %s247 = smul.addr %s244, 256
        %s248 = sadd.s32 %s246, %s247
        %s249 = smul.addr %s248, 4
        %s250 = scalar_lea.vmem %s0, %s249
        %p251 = pneg %p60
        %p252 = pneg %p57
        %p253 = scmp.lt.s32.totalorder %s23, 0
        %s254 = scalar_select %p253, %s23, 0
        %p255 = scmp.lt.s32.totalorder %s25, 0
        %s256 = scalar_select %p255, %s25, 0
        %s257 = smul.addr %s254, 4
        %s258 = sadd.s32 %s256, %s257
        %s259 = smul.addr %s258, 4
        %s260 = scalar_lea.vmem %s1, %s259
        %p261 = pneg %p88
        %p262 = pneg %p85
        %p263 = scmp.lt.s32.totalorder %s23, 0
        %s264 = scalar_select %p263, %s23, 0
        %p265 = scmp.lt.s32.totalorder %s25, 0
        %s266 = scalar_select %p265, %s25, 0
        %s267 = sadd.s32 %s266, %s264
        %s268 = scalar_lea.vmem %s2, %s267
        %p269 = pneg %p116
        %p270 = pneg %p113
        %p271 = scmp.lt.s32.totalorder %s23, 0
        %s272 = scalar_select %p271, %s23, 0
        %p273 = scmp.lt.s32.totalorder %s25, 0
        %s274 = scalar_select %p273, %s25, 0
        %s275 = sadd.s32 %s274, %s272
        %s276 = scalar_lea.vmem %s3, %s275
        %p277 = pneg %p144
        %p278 = pneg %p141
        %p279 = pneg %p174
        %p280 = pneg %p171
        %s281 = sand.u32 %s161, 1
        %s282 = scalar_lea.sflag [#allocation3], %s281
        %s283 = sand.u32 %s161, 1
        %s284 = smul.addr %s283, 256
        %s285 = scalar_lea.vmem [#allocation2], %s284
        %s286 = smul.u32 64, %s24
        %p287 = scmp.lt.s32.totalorder %s23, 0
        %s288 = scalar_select %p287, %s23, 0
        %p289 = scmp.lt.s32.totalorder %s286, 255
        %s290 = scalar_select %p289, %s286, 255
        %s291 = smul.addr %s288, 256
        %s292 = sadd.s32 %s290, %s291
        %s293 = smul.addr %s292, 4
        %s294 = scalar_lea.vmem %s0, %s293
        %s295 = smul.u32 64, %s24
        %p296 = scmp.lt.s32.totalorder %s23, 0
        %s297 = scalar_select %p296, %s23, 0
        %p298 = scmp.lt.s32.totalorder %s25, 0
        %s299 = scalar_select %p298, %s25, 0
        %s300 = smul.addr %s297, 4
        %s301 = sadd.s32 %s299, %s300
        %s302 = smul.addr %s301, 4
        %s303 = scalar_lea.vmem %s1, %s302
        %p304 = scmp.lt.s32.totalorder %s23, 0
        %s305 = scalar_select %p304, %s23, 0
        %p306 = scmp.lt.s32.totalorder %s25, 0
        %s307 = scalar_select %p306, %s25, 0
        %s308 = sadd.s32 %s307, %s305
        %s309 = scalar_lea.vmem %s2, %s308
        %p310 = scmp.lt.s32.totalorder %s23, 0
        %s311 = scalar_select %p310, %s23, 0
        %p312 = scmp.lt.s32.totalorder %s25, 0
        %s313 = scalar_select %p312, %s25, 0
        %s314 = sadd.s32 %s313, %s311
        %s315 = scalar_lea.vmem %s3, %s314
        %s316 = smul.u32 64, %s24
        %v318 = vld [vmem:[%s294] sm:$0xf]
        %v319 = vld [vmem:[%s294 + $0x4] sm:$0xf]
        %v320 = vld [vmem:[%s294 + $0x8] sm:$0xf]
        %v321 = vld [vmem:[%s294 + $0xc] sm:$0xf]
        %v322 = vld [vmem:[%s294 + $0x10] sm:$0xf]
        %v323 = vld [vmem:[%s294 + $0x14] sm:$0xf]
        %v324 = vld [vmem:[%s294 + $0x18] sm:$0xf]
        %v325 = vld [vmem:[%s294 + $0x1c] sm:$0xf]
        %v326 = vld [vmem:[%s294 + $0x20] sm:$0xf]
        %v327 = vld [vmem:[%s294 + $0x24] sm:$0xf]
        %v328 = vld [vmem:[%s294 + $0x28] sm:$0xf]
        %v329 = vld [vmem:[%s294 + $0x2c] sm:$0xf]
        %v330 = vld [vmem:[%s294 + $0x30] sm:$0xf]
        %v331 = vld [vmem:[%s294 + $0x34] sm:$0xf]
        %v332 = vld [vmem:[%s294 + $0x38] sm:$0xf]
        %v333 = vld [vmem:[%s294 + $0x3c] sm:$0xf]
        %v334 = vld [vmem:[%s294 + $0x40] sm:$0xf]
        %v335 = vld [vmem:[%s294 + $0x44] sm:$0xf]
        %v336 = vld [vmem:[%s294 + $0x48] sm:$0xf]
        %v337 = vld [vmem:[%s294 + $0x4c] sm:$0xf]
        %v338 = vld [vmem:[%s294 + $0x50] sm:$0xf]
        %v339 = vld [vmem:[%s294 + $0x54] sm:$0xf]
        %v340 = vld [vmem:[%s294 + $0x58] sm:$0xf]
        %v341 = vld [vmem:[%s294 + $0x5c] sm:$0xf]
        %v342 = vld [vmem:[%s294 + $0x60] sm:$0xf]
        %v343 = vld [vmem:[%s294 + $0x64] sm:$0xf]
        %v344 = vld [vmem:[%s294 + $0x68] sm:$0xf]
        %v345 = vld [vmem:[%s294 + $0x6c] sm:$0xf]
        %v346 = vld [vmem:[%s294 + $0x70] sm:$0xf]
        %v347 = vld [vmem:[%s294 + $0x74] sm:$0xf]
        %v348 = vld [vmem:[%s294 + $0x78] sm:$0xf]
        %v349 = vld [vmem:[%s294 + $0x7c] sm:$0xf]
        %v350 = vld [vmem:[%s294 + $0x80] sm:$0xf]
        %v351 = vld [vmem:[%s294 + $0x84] sm:$0xf]
        %v352 = vld [vmem:[%s294 + $0x88] sm:$0xf]
        %v353 = vld [vmem:[%s294 + $0x8c] sm:$0xf]
        %v354 = vld [vmem:[%s294 + $0x90] sm:$0xf]
        %v355 = vld [vmem:[%s294 + $0x94] sm:$0xf]
        %v356 = vld [vmem:[%s294 + $0x98] sm:$0xf]
        %v357 = vld [vmem:[%s294 + $0x9c] sm:$0xf]
        %v358 = vld [vmem:[%s294 + $0xa0] sm:$0xf]
        %v359 = vld [vmem:[%s294 + $0xa4] sm:$0xf]
        %v360 = vld [vmem:[%s294 + $0xa8] sm:$0xf]
        %v361 = vld [vmem:[%s294 + $0xac] sm:$0xf]
        %v362 = vld [vmem:[%s294 + $0xb0] sm:$0xf]
        %v363 = vld [vmem:[%s294 + $0xb4] sm:$0xf]
        %v364 = vld [vmem:[%s294 + $0xb8] sm:$0xf]
        %v365 = vld [vmem:[%s294 + $0xbc] sm:$0xf]
        %v366 = vld [vmem:[%s294 + $0xc0] sm:$0xf]
        %v367 = vld [vmem:[%s294 + $0xc4] sm:$0xf]
        %v368 = vld [vmem:[%s294 + $0xc8] sm:$0xf]
        %v369 = vld [vmem:[%s294 + $0xcc] sm:$0xf]
        %v370 = vld [vmem:[%s294 + $0xd0] sm:$0xf]
        %v371 = vld [vmem:[%s294 + $0xd4] sm:$0xf]
        %v372 = vld [vmem:[%s294 + $0xd8] sm:$0xf]
        %v373 = vld [vmem:[%s294 + $0xdc] sm:$0xf]
        %v374 = vld [vmem:[%s294 + $0xe0] sm:$0xf]
        %v375 = vld [vmem:[%s294 + $0xe4] sm:$0xf]
        %v376 = vld [vmem:[%s294 + $0xe8] sm:$0xf]
        %v377 = vld [vmem:[%s294 + $0xec] sm:$0xf]
        %v378 = vld [vmem:[%s294 + $0xf0] sm:$0xf]
        %v379 = vld [vmem:[%s294 + $0xf4] sm:$0xf]
        %v380 = vld [vmem:[%s294 + $0xf8] sm:$0xf]
        %v381 = vld [vmem:[%s294 + $0xfc] sm:$0xf]
        %v382 = vld [vmem:[%s303] sm:$0xf]
        %v383 = vld [vmem:[%s303 + $0x4] sm:$0xf]
        %v384 = vld [vmem:[%s303 + $0x8] sm:$0xf]
        %v385 = vld [vmem:[%s303 + $0xc] sm:$0x3]
        %v450 = vunpack.c.l.b16 %v318
        %v451 = vunpack.c.l.b16 %v319
        %v452 = vunpack.c.l.b16 %v320
        %v453 = vunpack.c.l.b16 %v321
        %v454 = vunpack.c.l.b16 %v322
        %v455 = vunpack.c.l.b16 %v323
        %v456 = vunpack.c.l.b16 %v324
        %v457 = vunpack.c.l.b16 %v325
        %v458 = vunpack.c.l.b16 %v326
        %v459 = vunpack.c.l.b16 %v327
        %v460 = vunpack.c.l.b16 %v328
        %v461 = vunpack.c.l.b16 %v329
        %v462 = vunpack.c.l.b16 %v330
        %v463 = vunpack.c.l.b16 %v331
        %v464 = vunpack.c.l.b16 %v332
        %v465 = vunpack.c.l.b16 %v333
        %v466 = vunpack.c.l.b16 %v334
        %v467 = vunpack.c.l.b16 %v335
        %v468 = vunpack.c.l.b16 %v336
        %v469 = vunpack.c.l.b16 %v337
        %v470 = vunpack.c.l.b16 %v338
        %v471 = vunpack.c.l.b16 %v339
        %v472 = vunpack.c.l.b16 %v340
        %v473 = vunpack.c.l.b16 %v341
        %v474 = vunpack.c.l.b16 %v342
        %v475 = vunpack.c.l.b16 %v343
        %v476 = vunpack.c.l.b16 %v344
        %v477 = vunpack.c.l.b16 %v345
        %v478 = vunpack.c.l.b16 %v346
        %v479 = vunpack.c.l.b16 %v347
        %v480 = vunpack.c.l.b16 %v348
        %v481 = vunpack.c.l.b16 %v349
        %v482 = vunpack.c.l.b16 %v350
        %v483 = vunpack.c.l.b16 %v351
        %v484 = vunpack.c.l.b16 %v352
        %v485 = vunpack.c.l.b16 %v353
        %v486 = vunpack.c.l.b16 %v354
        %v487 = vunpack.c.l.b16 %v355
        %v488 = vunpack.c.l.b16 %v356
        %v489 = vunpack.c.l.b16 %v357
        %v490 = vunpack.c.l.b16 %v358
        %v491 = vunpack.c.l.b16 %v359
        %v492 = vunpack.c.l.b16 %v360
        %v493 = vunpack.c.l.b16 %v361
        %v494 = vunpack.c.l.b16 %v362
        %v495 = vunpack.c.l.b16 %v363
        %v496 = vunpack.c.l.b16 %v364
        %v497 = vunpack.c.l.b16 %v365
        %v498 = vunpack.c.l.b16 %v366
        %v499 = vunpack.c.l.b16 %v367
        %v500 = vunpack.c.l.b16 %v368
        %v501 = vunpack.c.l.b16 %v369
        %v502 = vunpack.c.l.b16 %v370
        %v503 = vunpack.c.l.b16 %v371
        %v504 = vunpack.c.l.b16 %v372
        %v505 = vunpack.c.l.b16 %v373
        %v506 = vunpack.c.l.b16 %v374
        %v507 = vunpack.c.l.b16 %v375
        %v508 = vunpack.c.l.b16 %v376
        %v509 = vunpack.c.l.b16 %v377
        %v510 = vunpack.c.l.b16 %v378
        %v511 = vunpack.c.l.b16 %v379
        %v512 = vunpack.c.l.b16 %v380
        %v513 = vunpack.c.l.b16 %v381
        %v514 = vpack.c.b16 %v451, %v450
        %v515 = vpack.c.b16 %v453, %v452
        %v516 = vpack.c.b16 %v455, %v454
        %v517 = vpack.c.b16 %v457, %v456
        %v518 = vpack.c.b16 %v459, %v458
        %v519 = vpack.c.b16 %v461, %v460
        %v520 = vpack.c.b16 %v463, %v462
        %v521 = vpack.c.b16 %v465, %v464
        %v522 = vpack.c.b16 %v467, %v466
        %v523 = vpack.c.b16 %v469, %v468
        %v524 = vpack.c.b16 %v471, %v470
        %v525 = vpack.c.b16 %v473, %v472
        %v526 = vpack.c.b16 %v475, %v474
        %v527 = vpack.c.b16 %v477, %v476
        %v528 = vpack.c.b16 %v479, %v478
        %v529 = vpack.c.b16 %v481, %v480
        %v530 = vpack.c.b16 %v483, %v482
        %v531 = vpack.c.b16 %v485, %v484
        %v532 = vpack.c.b16 %v487, %v486
        %v533 = vpack.c.b16 %v489, %v488
        %v534 = vpack.c.b16 %v491, %v490
        %v535 = vpack.c.b16 %v493, %v492
        %v536 = vpack.c.b16 %v495, %v494
        %v537 = vpack.c.b16 %v497, %v496
        %v538 = vpack.c.b16 %v499, %v498
        %v539 = vpack.c.b16 %v501, %v500
        %v540 = vpack.c.b16 %v503, %v502
        %v541 = vpack.c.b16 %v505, %v504
        %v542 = vpack.c.b16 %v507, %v506
        %v543 = vpack.c.b16 %v509, %v508
        %v544 = vpack.c.b16 %v511, %v510
        %v545 = vpack.c.b16 %v513, %v512
        %v550 = vunpack.c.l.b16 %v382
        %v551 = vunpack.c.l.b16 %v383
        %v552 = vunpack.c.l.b16 %v384
        %v553 = vunpack.c.l.b16 %v385
        %v554 = vpack.c.b16 %v551, %v550
        %v555 = vpack.c.b16 %v553, %v552
        %vm557 = vcmask 220160
        %v559 = vsel %vm557, %v514, 0
        %v562 = vsel %vm557, %v515, 0
        %v565 = vsel %vm557, %v516, 0
        %v568 = vsel %vm557, %v517, 0
        %v571 = vsel %vm557, %v518, 0
        %v574 = vsel %vm557, %v519, 0
        %v577 = vsel %vm557, %v520, 0
        %v580 = vsel %vm557, %v521, 0
        %v583 = vsel %vm557, %v522, 0
        %v586 = vsel %vm557, %v523, 0
        %v589 = vsel %vm557, %v524, 0
        %v592 = vsel %vm557, %v525, 0
        %v595 = vsel %vm557, %v526, 0
        %v598 = vsel %vm557, %v527, 0
        %v601 = vsel %vm557, %v528, 0
        %v604 = vsel %vm557, %v529, 0
        %v607 = vsel %vm557, %v530, 0
        %v610 = vsel %vm557, %v531, 0
        %v613 = vsel %vm557, %v532, 0
        %v616 = vsel %vm557, %v533, 0
        %v619 = vsel %vm557, %v534, 0
        %v622 = vsel %vm557, %v535, 0
        %v625 = vsel %vm557, %v536, 0
        %v628 = vsel %vm557, %v537, 0
        %v631 = vsel %vm557, %v538, 0
        %v634 = vsel %vm557, %v539, 0
        %v637 = vsel %vm557, %v540, 0
        %v640 = vsel %vm557, %v541, 0
        %v643 = vsel %vm557, %v542, 0
        %v646 = vsel %vm557, %v543, 0
        %v649 = vsel %vm557, %v544, 0
        %v652 = vsel %vm557, %v545, 0
        %vm654 = vcmask 1044480
        %vm655 = vcmask 1045504
        %v656 = vsel %vm654, 4294967295, 65535
        %v657 = vsel %vm655, %v656, 0
        %v659 = vand.u32 %v555, %v657
        %661 = vmatpush.bf16.msra.mxu0 0
        %662 = vmatpush.bf16.msra.mxu0 0
        %663 = vmatpush.bf16.msra.mxu0 0
        %664 = vmatpush.bf16.msra.mxu0 0
        %665 = vmatpush.bf16.msra.mxu0 0
        %666 = vmatpush.bf16.msra.mxu0 0
        %667 = vmatpush.bf16.msra.mxu0 %v659
        %668 = vmatpush.bf16.msra.mxu0 %v554
        %669 = vmatmul.bf16.gmra.mxu0 %v559
        %v670 = vpop.f32.mrf.mxu0
        %v671 = vadd.f32 0.0, %v670
        %v672 = vpop.f32.mrf.mxu0
        %v673 = vadd.f32 0.0, %v672
        %674 = vmatmul.bf16.gmra.mxu0 %v562
        %v675 = vpop.f32.mrf.mxu0
        %v676 = vadd.f32 0.0, %v675
        %v677 = vpop.f32.mrf.mxu0
        %v678 = vadd.f32 0.0, %v677
        %679 = vmatmul.bf16.gmra.mxu0 %v565
        %v680 = vpop.f32.mrf.mxu0
        %v681 = vadd.f32 0.0, %v680
        %v682 = vpop.f32.mrf.mxu0
        %v683 = vadd.f32 0.0, %v682
        %684 = vmatmul.bf16.gmra.mxu0 %v568
        %v685 = vpop.f32.mrf.mxu0
        %v686 = vadd.f32 0.0, %v685
        %v687 = vpop.f32.mrf.mxu0
        %v688 = vadd.f32 0.0, %v687
        %689 = vmatmul.bf16.gmra.mxu0 %v571
        %v690 = vpop.f32.mrf.mxu0
        %v691 = vadd.f32 0.0, %v690
        %v692 = vpop.f32.mrf.mxu0
        %v693 = vadd.f32 0.0, %v692
        %694 = vmatmul.bf16.gmra.mxu0 %v574
        %v695 = vpop.f32.mrf.mxu0
        %v696 = vadd.f32 0.0, %v695
        %v697 = vpop.f32.mrf.mxu0
        %v698 = vadd.f32 0.0, %v697
        %699 = vmatmul.bf16.gmra.mxu0 %v577
        %v700 = vpop.f32.mrf.mxu0
        %v701 = vadd.f32 0.0, %v700
        %v702 = vpop.f32.mrf.mxu0
        %v703 = vadd.f32 0.0, %v702
        %704 = vmatmul.bf16.gmra.mxu0 %v580
        %v705 = vpop.f32.mrf.mxu0
        %v706 = vadd.f32 0.0, %v705
        %v707 = vpop.f32.mrf.mxu0
        %v708 = vadd.f32 0.0, %v707
        %709 = vmatmul.bf16.gmra.mxu0 %v583
        %v710 = vpop.f32.mrf.mxu0
        %v711 = vadd.f32 0.0, %v710
        %v712 = vpop.f32.mrf.mxu0
        %v713 = vadd.f32 0.0, %v712
        %714 = vmatmul.bf16.gmra.mxu0 %v586
        %v715 = vpop.f32.mrf.mxu0
        %v716 = vadd.f32 0.0, %v715
        %v717 = vpop.f32.mrf.mxu0
        %v718 = vadd.f32 0.0, %v717
        %719 = vmatmul.bf16.gmra.mxu0 %v589
        %v720 = vpop.f32.mrf.mxu0
        %v721 = vadd.f32 0.0, %v720
        %v722 = vpop.f32.mrf.mxu0
        %v723 = vadd.f32 0.0, %v722
        %724 = vmatmul.bf16.gmra.mxu0 %v592
        %v725 = vpop.f32.mrf.mxu0
        %v726 = vadd.f32 0.0, %v725
        %v727 = vpop.f32.mrf.mxu0
        %v728 = vadd.f32 0.0, %v727
        %729 = vmatmul.bf16.gmra.mxu0 %v595
        %v730 = vpop.f32.mrf.mxu0
        %v731 = vadd.f32 0.0, %v730
        %v732 = vpop.f32.mrf.mxu0
        %v733 = vadd.f32 0.0, %v732
        %734 = vmatmul.bf16.gmra.mxu0 %v598
        %v735 = vpop.f32.mrf.mxu0
        %v736 = vadd.f32 0.0, %v735
        %v737 = vpop.f32.mrf.mxu0
        %v738 = vadd.f32 0.0, %v737
        %739 = vmatmul.bf16.gmra.mxu0 %v601
        %v740 = vpop.f32.mrf.mxu0
        %v741 = vadd.f32 0.0, %v740
        %v742 = vpop.f32.mrf.mxu0
        %v743 = vadd.f32 0.0, %v742
        %744 = vmatmul.bf16.gmra.mxu0 %v604
        %v745 = vpop.f32.mrf.mxu0
        %v746 = vadd.f32 0.0, %v745
        %v747 = vpop.f32.mrf.mxu0
        %v748 = vadd.f32 0.0, %v747
        %749 = vmatmul.bf16.gmra.mxu0 %v607
        %v750 = vpop.f32.mrf.mxu0
        %v751 = vadd.f32 0.0, %v750
        %v752 = vpop.f32.mrf.mxu0
        %v753 = vadd.f32 0.0, %v752
        %754 = vmatmul.bf16.gmra.mxu0 %v610
        %v755 = vpop.f32.mrf.mxu0
        %v756 = vadd.f32 0.0, %v755
        %v757 = vpop.f32.mrf.mxu0
        %v758 = vadd.f32 0.0, %v757
        %759 = vmatmul.bf16.gmra.mxu0 %v613
        %v760 = vpop.f32.mrf.mxu0
        %v761 = vadd.f32 0.0, %v760
        %v762 = vpop.f32.mrf.mxu0
        %v763 = vadd.f32 0.0, %v762
        %764 = vmatmul.bf16.gmra.mxu0 %v616
        %v765 = vpop.f32.mrf.mxu0
        %v766 = vadd.f32 0.0, %v765
        %v767 = vpop.f32.mrf.mxu0
        %v768 = vadd.f32 0.0, %v767
        %769 = vmatmul.bf16.gmra.mxu0 %v619
        %v770 = vpop.f32.mrf.mxu0
        %v771 = vadd.f32 0.0, %v770
        %v772 = vpop.f32.mrf.mxu0
        %v773 = vadd.f32 0.0, %v772
        %774 = vmatmul.bf16.gmra.mxu0 %v622
        %v775 = vpop.f32.mrf.mxu0
        %v776 = vadd.f32 0.0, %v775
        %v777 = vpop.f32.mrf.mxu0
        %v778 = vadd.f32 0.0, %v777
        %779 = vmatmul.bf16.gmra.mxu0 %v625
        %v780 = vpop.f32.mrf.mxu0
        %v781 = vadd.f32 0.0, %v780
        %v782 = vpop.f32.mrf.mxu0
        %v783 = vadd.f32 0.0, %v782
        %784 = vmatmul.bf16.gmra.mxu0 %v628
        %v785 = vpop.f32.mrf.mxu0
        %v786 = vadd.f32 0.0, %v785
        %v787 = vpop.f32.mrf.mxu0
        %v788 = vadd.f32 0.0, %v787
        %789 = vmatmul.bf16.gmra.mxu0 %v631
        %v790 = vpop.f32.mrf.mxu0
        %v791 = vadd.f32 0.0, %v790
        %v792 = vpop.f32.mrf.mxu0
        %v793 = vadd.f32 0.0, %v792
        %794 = vmatmul.bf16.gmra.mxu0 %v634
        %v795 = vpop.f32.mrf.mxu0
        %v796 = vadd.f32 0.0, %v795
        %v797 = vpop.f32.mrf.mxu0
        %v798 = vadd.f32 0.0, %v797
        %799 = vmatmul.bf16.gmra.mxu0 %v637
        %v800 = vpop.f32.mrf.mxu0
        %v801 = vadd.f32 0.0, %v800
        %v802 = vpop.f32.mrf.mxu0
        %v803 = vadd.f32 0.0, %v802
        %804 = vmatmul.bf16.gmra.mxu0 %v640
        %v805 = vpop.f32.mrf.mxu0
        %v806 = vadd.f32 0.0, %v805
        %v807 = vpop.f32.mrf.mxu0
        %v808 = vadd.f32 0.0, %v807
        %809 = vmatmul.bf16.gmra.mxu0 %v643
        %v810 = vpop.f32.mrf.mxu0
        %v811 = vadd.f32 0.0, %v810
        %v812 = vpop.f32.mrf.mxu0
        %v813 = vadd.f32 0.0, %v812
        %814 = vmatmul.bf16.gmra.mxu0 %v646
        %v815 = vpop.f32.mrf.mxu0
        %v816 = vadd.f32 0.0, %v815
        %v817 = vpop.f32.mrf.mxu0
        %v818 = vadd.f32 0.0, %v817
        %819 = vmatmul.bf16.gmra.mxu0 %v649
        %v820 = vpop.f32.mrf.mxu0
        %v821 = vadd.f32 0.0, %v820
        %v822 = vpop.f32.mrf.mxu0
        %v823 = vadd.f32 0.0, %v822
        %824 = vmatmul.bf16.gmra.mxu0 %v652
        %v825 = vpop.f32.mrf.mxu0
        %v826 = vadd.f32 0.0, %v825
        %v827 = vpop.f32.mrf.mxu0
        %v828 = vadd.f32 0.0, %v827
        %829 = vdwg.mxu0
        %v830 = vld [vmem:[%s309] sm:$0x1]
        %v832 = vperm.slane %v830, 0
        %v834 = vmul.f32 %v671, %v832
        %v835 = vmul.f32 %v673, %v832
        %v836 = vmul.f32 %v676, %v832
        %v837 = vmul.f32 %v678, %v832
        %v838 = vmul.f32 %v681, %v832
        %v839 = vmul.f32 %v683, %v832
        %v840 = vmul.f32 %v686, %v832
        %v841 = vmul.f32 %v688, %v832
        %v842 = vmul.f32 %v691, %v832
        %v843 = vmul.f32 %v693, %v832
        %v844 = vmul.f32 %v696, %v832
        %v845 = vmul.f32 %v698, %v832
        %v846 = vmul.f32 %v701, %v832
        %v847 = vmul.f32 %v703, %v832
        %v848 = vmul.f32 %v706, %v832
        %v849 = vmul.f32 %v708, %v832
        %v850 = vmul.f32 %v711, %v832
        %v851 = vmul.f32 %v713, %v832
        %v852 = vmul.f32 %v716, %v832
        %v853 = vmul.f32 %v718, %v832
        %v854 = vmul.f32 %v721, %v832
        %v855 = vmul.f32 %v723, %v832
        %v856 = vmul.f32 %v726, %v832
        %v857 = vmul.f32 %v728, %v832
        %v858 = vmul.f32 %v731, %v832
        %v859 = vmul.f32 %v733, %v832
        %v860 = vmul.f32 %v736, %v832
        %v861 = vmul.f32 %v738, %v832
        %v862 = vmul.f32 %v741, %v832
        %v863 = vmul.f32 %v743, %v832
        %v864 = vmul.f32 %v746, %v832
        %v865 = vmul.f32 %v748, %v832
        %v866 = vmul.f32 %v751, %v832
        %v867 = vmul.f32 %v753, %v832
        %v868 = vmul.f32 %v756, %v832
        %v869 = vmul.f32 %v758, %v832
        %v870 = vmul.f32 %v761, %v832
        %v871 = vmul.f32 %v763, %v832
        %v872 = vmul.f32 %v766, %v832
        %v873 = vmul.f32 %v768, %v832
        %v874 = vmul.f32 %v771, %v832
        %v875 = vmul.f32 %v773, %v832
        %v876 = vmul.f32 %v776, %v832
        %v877 = vmul.f32 %v778, %v832
        %v878 = vmul.f32 %v781, %v832
        %v879 = vmul.f32 %v783, %v832
        %v880 = vmul.f32 %v786, %v832
        %v881 = vmul.f32 %v788, %v832
        %v882 = vmul.f32 %v791, %v832
        %v883 = vmul.f32 %v793, %v832
        %v884 = vmul.f32 %v796, %v832
        %v885 = vmul.f32 %v798, %v832
        %v886 = vmul.f32 %v801, %v832
        %v887 = vmul.f32 %v803, %v832
        %v888 = vmul.f32 %v806, %v832
        %v889 = vmul.f32 %v808, %v832
        %v890 = vmul.f32 %v811, %v832
        %v891 = vmul.f32 %v813, %v832
        %v892 = vmul.f32 %v816, %v832
        %v893 = vmul.f32 %v818, %v832
        %v894 = vmul.f32 %v821, %v832
        %v895 = vmul.f32 %v823, %v832
        %v896 = vmul.f32 %v826, %v832
        %v897 = vmul.f32 %v828, %v832
        %v898 = vld [vmem:[%s315] sm:$0x1]
        %v900 = vperm.slane %v898, 0
        %v902 = vadd.f32 %v834, %v900
        %v903 = vadd.f32 %v835, %v900
        %v904 = vadd.f32 %v836, %v900
        %v905 = vadd.f32 %v837, %v900
        %v906 = vadd.f32 %v838, %v900
        %v907 = vadd.f32 %v839, %v900
        %v908 = vadd.f32 %v840, %v900
        %v909 = vadd.f32 %v841, %v900
        %v910 = vadd.f32 %v842, %v900
        %v911 = vadd.f32 %v843, %v900
        %v912 = vadd.f32 %v844, %v900
        %v913 = vadd.f32 %v845, %v900
        %v914 = vadd.f32 %v846, %v900
        %v915 = vadd.f32 %v847, %v900
        %v916 = vadd.f32 %v848, %v900
        %v917 = vadd.f32 %v849, %v900
        %v918 = vadd.f32 %v850, %v900
        %v919 = vadd.f32 %v851, %v900
        %v920 = vadd.f32 %v852, %v900
        %v921 = vadd.f32 %v853, %v900
        %v922 = vadd.f32 %v854, %v900
        %v923 = vadd.f32 %v855, %v900
        %v924 = vadd.f32 %v856, %v900
        %v925 = vadd.f32 %v857, %v900
        %v926 = vadd.f32 %v858, %v900
        %v927 = vadd.f32 %v859, %v900
        %v928 = vadd.f32 %v860, %v900
        %v929 = vadd.f32 %v861, %v900
        %v930 = vadd.f32 %v862, %v900
        %v931 = vadd.f32 %v863, %v900
        %v932 = vadd.f32 %v864, %v900
        %v933 = vadd.f32 %v865, %v900
        %v934 = vadd.f32 %v866, %v900
        %v935 = vadd.f32 %v867, %v900
        %v936 = vadd.f32 %v868, %v900
        %v937 = vadd.f32 %v869, %v900
        %v938 = vadd.f32 %v870, %v900
        %v939 = vadd.f32 %v871, %v900
        %v940 = vadd.f32 %v872, %v900
        %v941 = vadd.f32 %v873, %v900
        %v942 = vadd.f32 %v874, %v900
        %v943 = vadd.f32 %v875, %v900
        %v944 = vadd.f32 %v876, %v900
        %v945 = vadd.f32 %v877, %v900
        %v946 = vadd.f32 %v878, %v900
        %v947 = vadd.f32 %v879, %v900
        %v948 = vadd.f32 %v880, %v900
        %v949 = vadd.f32 %v881, %v900
        %v950 = vadd.f32 %v882, %v900
        %v951 = vadd.f32 %v883, %v900
        %v952 = vadd.f32 %v884, %v900
        %v953 = vadd.f32 %v885, %v900
        %v954 = vadd.f32 %v886, %v900
        %v955 = vadd.f32 %v887, %v900
        %v956 = vadd.f32 %v888, %v900
        %v957 = vadd.f32 %v889, %v900
        %v958 = vadd.f32 %v890, %v900
        %v959 = vadd.f32 %v891, %v900
        %v960 = vadd.f32 %v892, %v900
        %v961 = vadd.f32 %v893, %v900
        %v962 = vadd.f32 %v894, %v900
        %v963 = vadd.f32 %v895, %v900
        %v964 = vadd.f32 %v896, %v900
        %v965 = vadd.f32 %v897, %v900
        %v966 = vmax.f32 %v902, 0.0
        %v967 = vmax.f32 %v903, 0.0
        %v968 = vmax.f32 %v904, 0.0
        %v969 = vmax.f32 %v905, 0.0
        %v970 = vmax.f32 %v906, 0.0
        %v971 = vmax.f32 %v907, 0.0
        %v972 = vmax.f32 %v908, 0.0
        %v973 = vmax.f32 %v909, 0.0
        %v974 = vmax.f32 %v910, 0.0
        %v975 = vmax.f32 %v911, 0.0
        %v976 = vmax.f32 %v912, 0.0
        %v977 = vmax.f32 %v913, 0.0
        %v978 = vmax.f32 %v914, 0.0
        %v979 = vmax.f32 %v915, 0.0
        %v980 = vmax.f32 %v916, 0.0
        %v981 = vmax.f32 %v917, 0.0
        %v982 = vmax.f32 %v918, 0.0
        %v983 = vmax.f32 %v919, 0.0
        %v984 = vmax.f32 %v920, 0.0
        %v985 = vmax.f32 %v921, 0.0
        %v986 = vmax.f32 %v922, 0.0
        %v987 = vmax.f32 %v923, 0.0
        %v988 = vmax.f32 %v924, 0.0
        %v989 = vmax.f32 %v925, 0.0
        %v990 = vmax.f32 %v926, 0.0
        %v991 = vmax.f32 %v927, 0.0
        %v992 = vmax.f32 %v928, 0.0
        %v993 = vmax.f32 %v929, 0.0
        %v994 = vmax.f32 %v930, 0.0
        %v995 = vmax.f32 %v931, 0.0
        %v996 = vmax.f32 %v932, 0.0
        %v997 = vmax.f32 %v933, 0.0
        %v998 = vmax.f32 %v934, 0.0
        %v999 = vmax.f32 %v935, 0.0
        %v1000 = vmax.f32 %v936, 0.0
        %v1001 = vmax.f32 %v937, 0.0
        %v1002 = vmax.f32 %v938, 0.0
        %v1003 = vmax.f32 %v939, 0.0
        %v1004 = vmax.f32 %v940, 0.0
        %v1005 = vmax.f32 %v941, 0.0
        %v1006 = vmax.f32 %v942, 0.0
        %v1007 = vmax.f32 %v943, 0.0
        %v1008 = vmax.f32 %v944, 0.0
        %v1009 = vmax.f32 %v945, 0.0
        %v1010 = vmax.f32 %v946, 0.0
        %v1011 = vmax.f32 %v947, 0.0
        %v1012 = vmax.f32 %v948, 0.0
        %v1013 = vmax.f32 %v949, 0.0
        %v1014 = vmax.f32 %v950, 0.0
        %v1015 = vmax.f32 %v951, 0.0
        %v1016 = vmax.f32 %v952, 0.0
        %v1017 = vmax.f32 %v953, 0.0
        %v1018 = vmax.f32 %v954, 0.0
        %v1019 = vmax.f32 %v955, 0.0
        %v1020 = vmax.f32 %v956, 0.0
        %v1021 = vmax.f32 %v957, 0.0
        %v1022 = vmax.f32 %v958, 0.0
        %v1023 = vmax.f32 %v959, 0.0
        %v1024 = vmax.f32 %v960, 0.0
        %v1025 = vmax.f32 %v961, 0.0
        %v1026 = vmax.f32 %v962, 0.0
        %v1027 = vmax.f32 %v963, 0.0
        %v1028 = vmax.f32 %v964, 0.0
        %v1029 = vmax.f32 %v965, 0.0
        %v1030 = vpack.c.bf16 %v966, %v966
        %v1031 = vpack.c.bf16 %v967, %v967
        %v1032 = vpack.c.bf16 %v968, %v968
        %v1033 = vpack.c.bf16 %v969, %v969
        %v1034 = vpack.c.bf16 %v970, %v970
        %v1035 = vpack.c.bf16 %v971, %v971
        %v1036 = vpack.c.bf16 %v972, %v972
        %v1037 = vpack.c.bf16 %v973, %v973
        %v1038 = vpack.c.bf16 %v974, %v974
        %v1039 = vpack.c.bf16 %v975, %v975
        %v1040 = vpack.c.bf16 %v976, %v976
        %v1041 = vpack.c.bf16 %v977, %v977
        %v1042 = vpack.c.bf16 %v978, %v978
        %v1043 = vpack.c.bf16 %v979, %v979
        %v1044 = vpack.c.bf16 %v980, %v980
        %v1045 = vpack.c.bf16 %v981, %v981
        %v1046 = vpack.c.bf16 %v982, %v982
        %v1047 = vpack.c.bf16 %v983, %v983
        %v1048 = vpack.c.bf16 %v984, %v984
        %v1049 = vpack.c.bf16 %v985, %v985
        %v1050 = vpack.c.bf16 %v986, %v986
        %v1051 = vpack.c.bf16 %v987, %v987
        %v1052 = vpack.c.bf16 %v988, %v988
        %v1053 = vpack.c.bf16 %v989, %v989
        %v1054 = vpack.c.bf16 %v990, %v990
        %v1055 = vpack.c.bf16 %v991, %v991
        %v1056 = vpack.c.bf16 %v992, %v992
        %v1057 = vpack.c.bf16 %v993, %v993
        %v1058 = vpack.c.bf16 %v994, %v994
        %v1059 = vpack.c.bf16 %v995, %v995
        %v1060 = vpack.c.bf16 %v996, %v996
        %v1061 = vpack.c.bf16 %v997, %v997
        %v1062 = vpack.c.bf16 %v998, %v998
        %v1063 = vpack.c.bf16 %v999, %v999
        %v1064 = vpack.c.bf16 %v1000, %v1000
        %v1065 = vpack.c.bf16 %v1001, %v1001
        %v1066 = vpack.c.bf16 %v1002, %v1002
        %v1067 = vpack.c.bf16 %v1003, %v1003
        %v1068 = vpack.c.bf16 %v1004, %v1004
        %v1069 = vpack.c.bf16 %v1005, %v1005
        %v1070 = vpack.c.bf16 %v1006, %v1006
        %v1071 = vpack.c.bf16 %v1007, %v1007
        %v1072 = vpack.c.bf16 %v1008, %v1008
        %v1073 = vpack.c.bf16 %v1009, %v1009
        %v1074 = vpack.c.bf16 %v1010, %v1010
        %v1075 = vpack.c.bf16 %v1011, %v1011
        %v1076 = vpack.c.bf16 %v1012, %v1012
        %v1077 = vpack.c.bf16 %v1013, %v1013
        %v1078 = vpack.c.bf16 %v1014, %v1014
        %v1079 = vpack.c.bf16 %v1015, %v1015
        %v1080 = vpack.c.bf16 %v1016, %v1016
        %v1081 = vpack.c.bf16 %v1017, %v1017
        %v1082 = vpack.c.bf16 %v1018, %v1018
        %v1083 = vpack.c.bf16 %v1019, %v1019
        %v1084 = vpack.c.bf16 %v1020, %v1020
        %v1085 = vpack.c.bf16 %v1021, %v1021
        %v1086 = vpack.c.bf16 %v1022, %v1022
        %v1087 = vpack.c.bf16 %v1023, %v1023
        %v1088 = vpack.c.bf16 %v1024, %v1024
        %v1089 = vpack.c.bf16 %v1025, %v1025
        %v1090 = vpack.c.bf16 %v1026, %v1026
        %v1091 = vpack.c.bf16 %v1027, %v1027
        %v1092 = vpack.c.bf16 %v1028, %v1028
        %v1093 = vpack.c.bf16 %v1029, %v1029
        %1094 = vst [vmem:[%s285] sm:$0xf] %v1030
        %1095 = vst [vmem:[%s285 + $0x4] sm:$0xf] %v1031
        %1096 = vst [vmem:[%s285 + $0x8] sm:$0xf] %v1032
        %1097 = vst [vmem:[%s285 + $0xc] sm:$0xf] %v1033
        %1098 = vst [vmem:[%s285 + $0x10] sm:$0xf] %v1034
        %1099 = vst [vmem:[%s285 + $0x14] sm:$0xf] %v1035
        %1100 = vst [vmem:[%s285 + $0x18] sm:$0xf] %v1036
        %1101 = vst [vmem:[%s285 + $0x1c] sm:$0xf] %v1037
        %1102 = vst [vmem:[%s285 + $0x20] sm:$0xf] %v1038
        %1103 = vst [vmem:[%s285 + $0x24] sm:$0xf] %v1039
        %1104 = vst [vmem:[%s285 + $0x28] sm:$0xf] %v1040
        %1105 = vst [vmem:[%s285 + $0x2c] sm:$0xf] %v1041
        %1106 = vst [vmem:[%s285 + $0x30] sm:$0xf] %v1042
        %1107 = vst [vmem:[%s285 + $0x34] sm:$0xf] %v1043
        %1108 = vst [vmem:[%s285 + $0x38] sm:$0xf] %v1044
        %1109 = vst [vmem:[%s285 + $0x3c] sm:$0xf] %v1045
        %1110 = vst [vmem:[%s285 + $0x40] sm:$0xf] %v1046
        %1111 = vst [vmem:[%s285 + $0x44] sm:$0xf] %v1047
        %1112 = vst [vmem:[%s285 + $0x48] sm:$0xf] %v1048
        %1113 = vst [vmem:[%s285 + $0x4c] sm:$0xf] %v1049
        %1114 = vst [vmem:[%s285 + $0x50] sm:$0xf] %v1050
        %1115 = vst [vmem:[%s285 + $0x54] sm:$0xf] %v1051
        %1116 = vst [vmem:[%s285 + $0x58] sm:$0xf] %v1052
        %1117 = vst [vmem:[%s285 + $0x5c] sm:$0xf] %v1053
        %1118 = vst [vmem:[%s285 + $0x60] sm:$0xf] %v1054
        %1119 = vst [vmem:[%s285 + $0x64] sm:$0xf] %v1055
        %1120 = vst [vmem:[%s285 + $0x68] sm:$0xf] %v1056
        %1121 = vst [vmem:[%s285 + $0x6c] sm:$0xf] %v1057
        %1122 = vst [vmem:[%s285 + $0x70] sm:$0xf] %v1058
        %1123 = vst [vmem:[%s285 + $0x74] sm:$0xf] %v1059
        %1124 = vst [vmem:[%s285 + $0x78] sm:$0xf] %v1060
        %1125 = vst [vmem:[%s285 + $0x7c] sm:$0xf] %v1061
        %1126 = vst [vmem:[%s285 + $0x80] sm:$0xf] %v1062
        %1127 = vst [vmem:[%s285 + $0x84] sm:$0xf] %v1063
        %1128 = vst [vmem:[%s285 + $0x88] sm:$0xf] %v1064
        %1129 = vst [vmem:[%s285 + $0x8c] sm:$0xf] %v1065
        %1130 = vst [vmem:[%s285 + $0x90] sm:$0xf] %v1066
        %1131 = vst [vmem:[%s285 + $0x94] sm:$0xf] %v1067
        %1132 = vst [vmem:[%s285 + $0x98] sm:$0xf] %v1068
        %1133 = vst [vmem:[%s285 + $0x9c] sm:$0xf] %v1069
        %1134 = vst [vmem:[%s285 + $0xa0] sm:$0xf] %v1070
        %1135 = vst [vmem:[%s285 + $0xa4] sm:$0xf] %v1071
        %1136 = vst [vmem:[%s285 + $0xa8] sm:$0xf] %v1072
        %1137 = vst [vmem:[%s285 + $0xac] sm:$0xf] %v1073
        %1138 = vst [vmem:[%s285 + $0xb0] sm:$0xf] %v1074
        %1139 = vst [vmem:[%s285 + $0xb4] sm:$0xf] %v1075
        %1140 = vst [vmem:[%s285 + $0xb8] sm:$0xf] %v1076
        %1141 = vst [vmem:[%s285 + $0xbc] sm:$0xf] %v1077
        %1142 = vst [vmem:[%s285 + $0xc0] sm:$0xf] %v1078
        %1143 = vst [vmem:[%s285 + $0xc4] sm:$0xf] %v1079
        %1144 = vst [vmem:[%s285 + $0xc8] sm:$0xf] %v1080
        %1145 = vst [vmem:[%s285 + $0xcc] sm:$0xf] %v1081
        %1146 = vst [vmem:[%s285 + $0xd0] sm:$0xf] %v1082
        %1147 = vst [vmem:[%s285 + $0xd4] sm:$0xf] %v1083
        %1148 = vst [vmem:[%s285 + $0xd8] sm:$0xf] %v1084
        %1149 = vst [vmem:[%s285 + $0xdc] sm:$0xf] %v1085
        %1150 = vst [vmem:[%s285 + $0xe0] sm:$0xf] %v1086
        %1151 = vst [vmem:[%s285 + $0xe4] sm:$0xf] %v1087
        %1152 = vst [vmem:[%s285 + $0xe8] sm:$0xf] %v1088
        %1153 = vst [vmem:[%s285 + $0xec] sm:$0xf] %v1089
        %1154 = vst [vmem:[%s285 + $0xf0] sm:$0xf] %v1090
        %1155 = vst [vmem:[%s285 + $0xf4] sm:$0xf] %v1091
        %1156 = vst [vmem:[%s285 + $0xf8] sm:$0xf] %v1092
        %1157 = vst [vmem:[%s285 + $0xfc] sm:$0xf] %v1093
        %s1158 = sand.u32 %s161, 1
        %s1159 = scalar_lea.sflag [#allocation3], %s1158
        %s1160 = sand.u32 %s161, 1
        %s1161 = smul.addr %s1160, 256
        %s1162 = scalar_lea.vmem [#allocation2], %s1161
        // Predicated region
        $region37: #{tpu_custom_call.1} parent=35 // pred_check
          %p1163 = pneg %p171
        $region38: #{tpu_custom_call.1} parent=35 // pred_check_branch
          %1165 = sbr.rel (%p1163) target = $region40
        $region39: #{tpu_custom_call.1} parent=35 // pred_region
          %s1166 = smul.u32 64, %s24
          %1168 = vsyncadd %s1159, 0
          %s1169 = sadd.s32 %s25, %s1166
          %s1170 = smul.addr %s23, 256
          %s1171 = sadd.s32 %s1169, %s1170
          %s1172 = smul.addr %s1171, 4
          %s1173 = scalar_lea.hbm %s4, %s1172
          %s1174 = sshll.u32 %s1162, 4
          %s1175 = int_to_ptr.vmem [resolvable:$true] %s1174
          %s1176 = sshll.u32 %s1173, 4
          %s1177 = int_to_ptr.hbm [resolvable:$true] %s1176
          %1182 = dma.vmem_to_hbm [thread:$0]  %s1175, 4096, %s1177, %s1159, 64, 64, 4
        $region40: #{tpu_custom_call.1} parent=35 // pred_fallthru
          _
      $region36: #{tpu_custom_call.1} parent=5 // pred_fallthru
        _
      %p1183 = scmp.le.s32.totalorder 2, %s13
      // Predicated region
      $region41: #{tpu_custom_call.1} parent=5 // pred_check
        %p1184 = pneg %p1183
      $region42: #{tpu_custom_call.1} parent=5 // pred_check_branch
        %1186 = sbr.rel (%p1184) target = $region44
      $region43: #{tpu_custom_call.1} parent=5 // pred_region
        %s1187 = ssub.s32 %s13, 2
        // Predicated region
        $region45: #{tpu_custom_call.1} parent=43 // pred_check
          %p1188 = pneg %p177
        $region46: #{tpu_custom_call.1} parent=43 // pred_check_branch
          %1190 = sbr.rel (%p1188) target = $region48
        $region47: #{tpu_custom_call.1} parent=43 // pred_region
          %s1191 = sand.u32 %s162, 1
          %s1192 = scalar_lea.sflag [#allocation3], %s1191
          %s1193 = sand.u32 %s162, 1
          %s1194 = smul.addr %s1193, 256
          %s1195 = scalar_lea.vmem [#allocation2], %s1194
          %1197 = dma.done %s1192, 4096
        $region48: #{tpu_custom_call.1} parent=43 // pred_fallthru
          _
      $region44: #{tpu_custom_call.1} parent=5 // pred_fallthru
        _
    $region6: #{tpu_custom_call.1} parent=1 // loop_footer
      %s17 = sadd.s32 1, %s13
    $region7: #{tpu_custom_call.1} parent=1 // loop_footer_branch
      %12 = sbr.rel target = $region3
    $region8: #{tpu_custom_call.1} parent=1 // loop_exit
      _
    %1198 = vsyncpa [#allocation3], 1
    %s1199 = scalar_lea.sflag [#allocation3], 1
    %1200 = vsyncpa %s1199, 1

</llo_original>
